<compile_context>
chip_gen: v5e
topology: v5e:2x2
jax: 0.10.0
libtpu: 0.0.40
codegen_flags: <defaults>
</compile_context>

<pallas_src>
import math

import jax
import jax.numpy as jnp
from jax.experimental import pallas as pl
from jax.experimental.pallas import tpu as pltpu


_TWO_PI = 2.0 * math.pi


def _cdiv(a, b):
    return -(-a // b)


def _round_up(a, b):
    return _cdiv(a, b) * b


def _make_kernel(k_pack):
    """Kernel over one row tile (all VPU; no degenerate K=1 MXU matmul).

    t_ref:     (TB, K)   f32 -- K original batch rows packed per output row
    w_ref:     (K, K*E)  f32 -- row j holds [W, W] (turns) in lanes
                                [j*E, (j+1)*E) and zeros elsewhere
    phase_ref: (1, K*E)  f32 -- [0]*E/2 + [0.25]*E/2 (turns), tiled K times
    out_ref:   (TB, K*E)
    """
    def kernel(t_ref, w_ref, phase_ref, out_ref):
        t = t_ref[...]
        x = phase_ref[...]
        for j in range(k_pack):                       # static, unrolled
            x = x + t[:, j:j + 1] * w_ref[j:j + 1, :]
        x = x - jnp.floor(x + 0.5)                    # reduce to [-0.5, 0.5) turns
        out_ref[...] = jnp.sin(_TWO_PI * x).astype(out_ref.dtype)
    return kernel


def _pick_row_tile(rows, lane_width):
    """Row tile: multiple of 8 (or full extent), VMEM-budgeted, balanced >=2 steps."""
    lane_pad = _round_up(lane_width, 128)
    # Double-buffered out tile + double-buffered t tile (t's lane dim pads to 128).
    bytes_per_row = 2 * 4 * (lane_pad + 128)
    tb_max = (12 << 20) // bytes_per_row              # ~12 MiB of tiles: safe on v5e/v6e/v7x
    tb_max = max(8, min(4096, (tb_max // 8) * 8))
    if rows <= 8:
        return rows                                   # single full-extent block
    n_steps = max(2, _cdiv(rows, tb_max))             # >=2 steps so both v7x TCs get work
    return min(tb_max, _round_up(_cdiv(rows, n_steps), 8))


class FourierFeatureEmbedding:
    """JAX/Pallas port of the PyTorch FourrierFeatureEmbedding module."""

    def __init__(self, embed_dim, scale=30.0, *, key, out_dtype=jnp.float32):
        assert embed_dim % 2 == 0
        self.embed_dim = embed_dim
        self.scale = scale
        self.out_dtype = out_dtype
        half = embed_dim // 2
        # Buffer: W = randn(embed_dim // 2) * scale (jax RNG; values differ from torch's RNG).
        self.W = jax.random.normal(key, (half,), dtype=jnp.float32) * scale

        # Once-per-W constants, in "turns": out = sin(2*pi*(t*[W, W] + [0, 0.25])).
        w_row = jnp.concatenate([self.W, self.W]).reshape(1, embed_dim)
        phase_row = jnp.concatenate(
            [jnp.zeros((half,), jnp.float32),
             jnp.full((half,), 0.25, jnp.float32)]).reshape(1, embed_dim)

        # Lane-packing factor: pack k batch rows per 128-lane output row when E < 128.
        if embed_dim < 128 and 128 % embed_dim == 0:
            self._k_pack = 128 // embed_dim
        else:
            self._k_pack = 1

        self._consts = {1: (w_row, phase_row)}
        if self._k_pack > 1:
            k = self._k_pack
            w_pk = jnp.kron(jnp.eye(k, dtype=jnp.float32), w_row)   # (k, k*E)
            ph_pk = jnp.tile(phase_row, (1, k))                     # (1, k*E)
            self._consts[k] = (w_pk, ph_pk)

    def __call__(self, t):
        if t.ndim == 2 and t.shape[-1] == 1:
            t = t[:, 0]
        assert t.ndim == 1, "expects t of shape (B,) or (B, 1)"
        B = int(t.shape[0])
        E = self.embed_dim
        t = t.astype(jnp.float32)

        # Lane-dense packed path when E < 128 and B divides evenly; otherwise the
        # unpacked fallback (block lane dim = full E, still correct).
        k = self._k_pack if (self._k_pack > 1 and B % self._k_pack == 0) else 1
        rows, lane = B // k, k * E
        w_const, phase_const = self._consts[k]

        tb = _pick_row_tile(rows, lane)
        grid = (_cdiv(rows, tb),)
        out_itemsize = jnp.dtype(self.out_dtype).itemsize

        out = pl.pallas_call(
            _make_kernel(k),
            out_shape=jax.ShapeDtypeStruct((rows, lane), self.out_dtype),
            grid=grid,
            in_specs=[
                pl.BlockSpec((tb, k), lambda i: (i, 0)),     # streamed rows of t
                pl.BlockSpec((k, lane), lambda i: (0, 0)),   # resident W constant (turns)
                pl.BlockSpec((1, lane), lambda i: (0, 0)),   # resident phase constant
            ],
            out_specs=pl.BlockSpec((tb, lane), lambda i: (i, 0)),
            compiler_params=pltpu.CompilerParams(
                dimension_semantics=("parallel",),           # v7x: shard grid over 2 TCs
                vmem_limit_bytes=32 * 1024 * 1024),
            cost_estimate=pl.CostEstimate(
                flops=(2 * k + 5) * B * E,
                transcendentals=B * E,
                bytes_accessed=4 * B + 4 * (k + 1) * lane + out_itemsize * B * E),
        )(t.reshape(rows, k), w_const, phase_const)

        # Row-major reshape of the same contiguous buffer back to (B, E).
        return out.reshape(B, E)


def _reference(t, W):
    if t.ndim == 1:
        t = t[:, None]
    proj = 2.0 * math.pi * t * W[None, :]
    return jnp.concatenate([jnp.sin(proj), jnp.cos(proj)], axis=-1)


if __name__ == "__main__":
    key = jax.random.PRNGKey(0)
    k_w, k_t, k_t2, k_t3 = jax.random.split(key, 4)

    embed_dim = 64
    scale = 30.0

    emb = FourierFeatureEmbedding(embed_dim, scale, key=k_w)

    # Both implementations are f32 with |2*pi*t*W| up to a few hundred radians
    # (scale=30); they differ by f32 rounding / range-reduction error in that
    # regime (~1e-4 absolute worst case), so compare with atol=5e-4.
    tol = dict(atol=5e-4, rtol=0.0)

    # 1) Small batch, lane-packed path (E=64 -> 2 rows per 128-lane output row).
    t = jax.random.uniform(k_t, (8,), dtype=jnp.float32)
    out = jax.block_until_ready(emb(t))
    assert out.shape == (8, embed_dim), out.shape
    assert jnp.allclose(out, _reference(t, emb.W), **tol), "mismatch (B=8)"

    # 2) Larger batch: multi-step grid with a ragged (masked-writeback) last block.
    t_big = jax.random.uniform(k_t2, (300,), dtype=jnp.float32)
    out_big = jax.block_until_ready(emb(t_big))
    assert out_big.shape == (300, embed_dim), out_big.shape
    assert jnp.allclose(out_big, _reference(t_big, emb.W), **tol), "mismatch (B=300)"

    # 3) Odd batch and (B, 1) input -> unpacked fallback path (block lane dim = full E).
    t_odd = jax.random.uniform(k_t3, (5, 1), dtype=jnp.float32)
    out_odd = jax.block_until_ready(emb(t_odd))
    assert out_odd.shape == (5, embed_dim), out_odd.shape
    assert jnp.allclose(out_odd, _reference(t_odd, emb.W), **tol), "mismatch (B=5)"

    print("KERNEL_OK")
</pallas_src>

<mosaic_0001>
module attributes {stable_mosaic.version = 11 : i64} {
  func.func @kernel(%arg0: i32, %arg1: memref<4x2xf32, #tpu.memory_space<vmem>>, %arg2: memref<2x128xf32, #tpu.memory_space<vmem>>, %arg3: memref<1x128xf32, #tpu.memory_space<vmem>>, %arg4: memref<4x128xf32, #tpu.memory_space<vmem>>) attributes {dimension_semantics = [#tpu.dimension_semantics<parallel>], iteration_bounds = array<i64: 1>, scalar_prefetch = 0 : i64, scratch_operands = 0 : i64, tpu.core_type = #tpu.core_type<tc>, window_params = [{transform_indices = @transform_0, window_bounds = array<i64: 4, 2>}, {pipeline_mode = #tpu.pipeline_mode<synchronous>, transform_indices = @transform_1, window_bounds = array<i64: 2, 128>}, {pipeline_mode = #tpu.pipeline_mode<synchronous>, transform_indices = @transform_2, window_bounds = array<i64: 1, 128>}, {transform_indices = @transform_3, window_bounds = array<i64: 4, 128>}]} {
    %c0 = arith.constant 0 : index
    %c0_0 = arith.constant 0 : index
    %0 = vector.load %arg1[%c0, %c0_0] : memref<4x2xf32, #tpu.memory_space<vmem>>, vector<4x2xf32>
    %c0_1 = arith.constant 0 : index
    %c0_2 = arith.constant 0 : index
    %1 = vector.load %arg3[%c0_1, %c0_2] : memref<1x128xf32, #tpu.memory_space<vmem>>, vector<1x128xf32>
    %2 = vector.extract_strided_slice %0 {offsets = [0, 0], sizes = [4, 1], strides = [1, 1]} : vector<4x2xf32> to vector<4x1xf32>
    %c0_3 = arith.constant 0 : index
    %c0_4 = arith.constant 0 : index
    %3 = vector.load %arg2[%c0_3, %c0_4] : memref<2x128xf32, #tpu.memory_space<vmem>>, vector<1x128xf32>
    %4 = vector.broadcast %2 : vector<4x1xf32> to vector<4x128xf32>
    %5 = vector.broadcast %3 : vector<1x128xf32> to vector<4x128xf32>
    %6 = arith.mulf %4, %5 : vector<4x128xf32>
    %7 = vector.broadcast %1 : vector<1x128xf32> to vector<4x128xf32>
    %8 = arith.addf %7, %6 : vector<4x128xf32>
    %9 = vector.extract_strided_slice %0 {offsets = [0, 1], sizes = [4, 1], strides = [1, 1]} : vector<4x2xf32> to vector<4x1xf32>
    %c1 = arith.constant 1 : index
    %c0_5 = arith.constant 0 : index
    %10 = vector.load %arg2[%c1, %c0_5] : memref<2x128xf32, #tpu.memory_space<vmem>>, vector<1x128xf32>
    %11 = vector.broadcast %9 : vector<4x1xf32> to vector<4x128xf32>
    %12 = vector.broadcast %10 : vector<1x128xf32> to vector<4x128xf32>
    %13 = arith.mulf %11, %12 : vector<4x128xf32>
    %14 = arith.addf %8, %13 : vector<4x128xf32>
    %cst = arith.constant 5.000000e-01 : f32
    %15 = vector.broadcast %cst : f32 to vector<4x128xf32>
    %16 = arith.addf %14, %15 : vector<4x128xf32>
    %17 = math.floor %16 : vector<4x128xf32>
    %18 = arith.subf %14, %17 : vector<4x128xf32>
    %cst_6 = arith.constant 6.28318548 : f32
    %19 = vector.broadcast %cst_6 : f32 to vector<4x128xf32>
    %20 = arith.mulf %19, %18 : vector<4x128xf32>
    %21 = math.sin %20 : vector<4x128xf32>
    %c0_7 = arith.constant 0 : index
    %c0_8 = arith.constant 0 : index
    %22 = vector.load %arg4[%c0_7, %c0_8] : memref<4x128xf32, #tpu.memory_space<vmem>>, vector<4x128xf32>
    tpu.vector_store %arg4[%c0_7, %c0_8], %21 {strides = array<i32>} : memref<4x128xf32, #tpu.memory_space<vmem>>, vector<4x128xf32>,
    return
  }
  func.func @transform_0(%arg0: i32) -> (i32, i32) {
    %c0_i32 = arith.constant 0 : i32
    %c0_i32_0 = arith.constant 0 : i32
    return %arg0, %c0_i32 : i32, i32
  }
  func.func @transform_1(%arg0: i32) -> (i32, i32) {
    %c0_i32 = arith.constant 0 : i32
    %c0_i32_0 = arith.constant 0 : i32
    %c0_i32_1 = arith.constant 0 : i32
    return %c0_i32, %c0_i32_0 : i32, i32
  }
  func.func @transform_2(%arg0: i32) -> (i32, i32) {
    %c0_i32 = arith.constant 0 : i32
    %c0_i32_0 = arith.constant 0 : i32
    %c0_i32_1 = arith.constant 0 : i32
    return %c0_i32, %c0_i32_0 : i32, i32
  }
  func.func @transform_3(%arg0: i32) -> (i32, i32) {
    %c0_i32 = arith.constant 0 : i32
    %c0_i32_0 = arith.constant 0 : i32
    return %arg0, %c0_i32 : i32, i32
  }
}

</mosaic_0001>

<llo_original>
// kernel: tpu_custom_call.1
$region0: #{tpu_custom_call.1}
  #allocation0 [shape = 'u32[]', space=smem, size = 0x4, offset = 0x4, fixed_abs, tag = 'smem constant byte address 0x4 - core index']
  #allocation1 [shape = 'u32[72,128]{1,0:T(1,128)}', space=vmem, size = 0x9000, scoped, tag = 'internal scratch']
  %s0 = inlined_call_operand.vmem [shape: f32[4,2], index: 0, kind: input, shape index: {}]
  %s1 = inlined_call_operand.vmem [shape: f32[2,128], index: 1, kind: input, shape index: {}]
  %s2 = inlined_call_operand.vmem [shape: f32[1,128], index: 2, kind: input, shape index: {}]
  %s3 = inlined_call_operand.hbm [shape: f32[4,128], index: 3, kind: output, shape index: {}]
  %s4 = sld [smem:[#allocation0]]
  $region22: #{tpu_custom_call.1} parent=0
    _
  %s6 = ssub.s32 1, %s4
  %s7 = scalar_select 0, %s6, %s4
  $region1: #{tpu_custom_call.1} parent=0
    #allocation2 [shape = 'u8[2048]{0}', space=vmem, size = 0x800, scoped, tag = 'output window, operand 0, single buffered']
    #allocation3 [shape = 's32[1]{0}', space=sflag, size = 0x4, scoped, tag = 'scoped memory for tpu_custom_call.1']
    %8 = vsyncpa [#allocation3], 0
    // Predicated region
    $region2: #{tpu_custom_call.1} parent=1 // pred_check
      _
    $region3: #{tpu_custom_call.1} parent=1 // pred_check_branch
      %10 = sbr.rel (0) target = $region5
    $region4: #{tpu_custom_call.1} parent=1 // pred_region
      _
    $region5: #{tpu_custom_call.1} parent=1 // pred_fallthru
      _
    // Predicated region
    $region6: #{tpu_custom_call.1} parent=1 // pred_check
      _
    $region7: #{tpu_custom_call.1} parent=1 // pred_check_branch
      %12 = sbr.rel (0) target = $region9
    $region8: #{tpu_custom_call.1} parent=1 // pred_region
      _
    $region9: #{tpu_custom_call.1} parent=1 // pred_fallthru
      _
    // Predicated region
    $region10: #{tpu_custom_call.1} parent=1 // pred_check
      _
    $region11: #{tpu_custom_call.1} parent=1 // pred_check_branch
      %14 = sbr.rel (0) target = $region13
    $region12: #{tpu_custom_call.1} parent=1 // pred_region
      _
    $region13: #{tpu_custom_call.1} parent=1 // pred_fallthru
      _
    %v15 = vld [vmem:[%s0] sm:$0xf]
    %v16 = vld [vmem:[%s2] sm:$0x1]
    %v17 = vld [vmem:[%s1] sm:$0x1]
    %19 = vset.pattern.permute.xlu0 0
    %20 = vperm.xlu0 %19, %v15
    %v21 = vpop.permute.xlu0 %20
    %v23 = vperm.slane %v17, 0
    %v24 = vmul.f32 %v21, %v23
    %v26 = vperm.slane %v16, 0
    %v28 = vadd.f32 %v26, %v24
    %v29 = vld [vmem:[%s1 + $0x1] sm:$0x1]
    %30 = vset.pattern.permute.xlu0 1
    %31 = vperm.xlu0 %30, %v15
    %v32 = vpop.permute.xlu0 %31
    %v34 = vperm.slane %v29, 0
    %v35 = vmul.f32 %v32, %v34
    %v36 = vadd.f32 %v28, %v35
    %v37 = vadd.f32 %v36, 0.5
    %v38 = vfloor.f32 %v37
    %v39 = vsub.f32 %v36, %v38
    %v40 = vmul.f32 %v39, 6.2831855
    %v41 = vand.u32 2147483647, %v40
    %vm42 = vcmp.le.f32.partialorder %v41, 0.7853982
    %vm43 = vcmp.lt.s32.totalorder %v40, 0
    %v44 = vand.u32 %v40, 2139095040
    %v45 = vshrl.u32 %v44, 23
    %v46 = vsub.s32 %v45, 127
    %v47 = vand.u32 2147483647, %v40
    %v48 = vand.u32 %v47, 8388607
    %v49 = vor.u32 %v48, 8388608
    %v50 = vsub.s32 0, %v49
    %v51 = vadd.s32 %v46, 1
    %vm52 = vcmp.gt.s32.totalorder %v51, 0
    %v53 = vsel %vm52, %v51, 0
    %v54 = vshrl.u32 %v53, 5
    %v55 = vand.u32 %v53, 31
    %v56 = vsub.s32 32, %v55
    %v57 = vshrl.u32 683565275, %v56
    %v58 = vshll.u32 683565275, %v55
    %v59 = vshrl.u32 2475754826, %v56
    %v60 = vor.u32 %v58, %v59
    %v61 = vshll.u32 2475754826, %v55
    %v62 = vshrl.u32 2131351028, %v56
    %v63 = vor.u32 %v61, %v62
    %v64 = vshll.u32 2131351028, %v55
    %v65 = vshrl.u32 2102212464, %v56
    %v66 = vor.u32 %v64, %v65
    %v67 = vshll.u32 2102212464, %v55
    %v68 = vshrl.u32 920167782, %v56
    %v69 = vor.u32 %v67, %v68
    %v70 = vshll.u32 920167782, %v55
    %v71 = vshrl.u32 1326507024, %v56
    %v72 = vor.u32 %v70, %v71
    %vm73 = vcmp.lt.s32.totalorder %v54, 1
    %vm74 = vcmp.lt.s32.totalorder %v54, 2
    %vm75 = vcmp.lt.s32.totalorder %v54, 3
    %vm76 = vcmp.lt.s32.totalorder %v54, 4
    %v77 = vsel %vm73, %v57, %v60
    %v78 = vsel %vm76, %v66, 2102212464
    %v79 = vsel %vm75, %v63, %v78
    %v80 = vsel %vm74, %v77, %v79
    %v81 = vsel %vm73, %v60, %v63
    %v82 = vsel %vm76, %v69, 920167782
    %v83 = vsel %vm75, %v66, %v82
    %v84 = vsel %vm74, %v81, %v83
    %v85 = vsel %vm73, %v63, %v66
    %v86 = vsel %vm76, %v72, 1326507024
    %v87 = vsel %vm75, %v69, %v86
    %v88 = vsel %vm74, %v85, %v87
    %v89 = vshll.u32 %v49, 8
    %v90 = vand.u32 %v89, 65535
    %v91 = vshrl.u32 %v89, 16
    %v92 = vand.u32 %v88, 65535
    %v93 = vshrl.u32 %v88, 16
    %v94 = vmul.u32 %v90, %v92
    %v95 = vmul.u32 %v90, %v93
    %v96 = vmul.u32 %v91, %v92
    %v97 = vmul.u32 %v91, %v93
    %v98 = vshll.u32 %v95, 16
    %v99 = vshrl.u32 %v95, 16
    %v100 = vshll.u32 %v96, 16
    %v101 = vshrl.u32 %v96, 16
    %vm102 = vc.u32 %v94, %v98
    %v103 = vsel %vm102, 1, 0
    %v104 = vadd.s32 %v94, %v98
    %v105 = vadd.s32 %v97, %v103
    %vm106 = vc.u32 %v104, %v100
    %v107 = vsel %vm106, 1, 0
    %v108 = vadd.s32 %v104, %v100
    %v109 = vadd.s32 %v105, %v107
    %v110 = vadd.s32 %v109, %v99
    %v111 = vadd.s32 %v110, %v101
    %v112 = vand.u32 %v89, 65535
    %v113 = vshrl.u32 %v89, 16
    %v114 = vand.u32 %v84, 65535
    %v115 = vshrl.u32 %v84, 16
    %v116 = vmul.u32 %v112, %v114
    %v117 = vmul.u32 %v112, %v115
    %v118 = vmul.u32 %v113, %v114
    %v119 = vmul.u32 %v113, %v115
    %v120 = vshll.u32 %v117, 16
    %v121 = vshrl.u32 %v117, 16
    %v122 = vshll.u32 %v118, 16
    %v123 = vshrl.u32 %v118, 16
    %vm124 = vc.u32 %v116, %v120
    %v125 = vsel %vm124, 1, 0
    %v126 = vadd.s32 %v116, %v120
    %v127 = vadd.s32 %v119, %v125
    %vm128 = vc.u32 %v126, %v122
    %v129 = vsel %vm128, 1, 0
    %v130 = vadd.s32 %v126, %v122
    %v131 = vadd.s32 %v127, %v129
    %v132 = vadd.s32 %v131, %v121
    %v133 = vadd.s32 %v132, %v123
    %v134 = vmul.u32 %v89, %v80
    %v135 = vadd.s32 %v111, %v130
    %vm136 = vc.u32 %v111, %v130
    %v137 = vadd.s32 %v133, 1
    %v138 = vsel %vm136, %v137, %v133
    %v139 = vadd.s32 %v134, %v138
    %v140 = vadd.s32 %v139, 536870912
    %v141 = vshrl.u32 %v140, 30
    %v142 = vshll.u32 %v141, 30
    %v143 = vsub.s32 %v139, %v142
    %vm144 = vcmp.lt.s32.totalorder %v143, 0
    %v145 = vsub.s32 0, %v143
    %v146 = vsel %vm144, %v145, %v143
    %v147 = vclz %v146
    %v148 = vsub.s32 %v147, 2
    %vm149 = vcmp.gt.s32.totalorder 0, %v148
    %v150 = vsel %vm149, 0, %v148
    %v151 = vsub.s32 32, %v150
    %v152 = vshll.u32 %v143, %v150
    %v153 = vshrl.u32 %v135, %v151
    %v154 = vor.u32 %v152, %v153
    %v155 = vsub.s32 4294967266, %v150
    %v156 = vadd.s32 %v155, 127
    %v157 = vshll.u32 %v156, 23
    %v158 = vor.u32 4788187, %v157
    %v159 = vand.u32 2147483647, %v158
    %v161 = vcvt.s32.f32 %v154
    %v162 = vmul.f32 %v161, %v159
    %v163 = vxor.u32 %v162, 2147483648
    %v164 = vsel %vm43, %v163, %v162
    %v165 = vsub.s32 4, %v141
    %v166 = vsel %vm43, %v165, %v141
    %v167 = vsel %vm42, %v40, %v164
    %v168 = vsel %vm42, 0, %v166
    %v169 = vmul.f32 %v167, %v167
    %v170 = vmul.f32 %v169, -0.001358992
    %v171 = vadd.f32 %v170, 0.041655596
    %v172 = vmul.f32 %v169, %v171
    %v173 = vadd.f32 %v172, -0.4999988
    %v174 = vmul.f32 %v169, %v173
    %v175 = vadd.f32 1.0, %v174
    %v176 = vmul.f32 %v167, %v167
    %v177 = vmul.f32 %v176, -0.00019511016
    %v178 = vadd.f32 %v177, 0.008332121
    %v179 = vmul.f32 %v176, %v178
    %v180 = vadd.f32 %v179, -0.16666654
    %v181 = vmul.f32 %v176, %v180
    %v182 = vadd.f32 %v181, 1.0
    %v183 = vmul.f32 %v182, %v167
    %vm184 = vweird.f32 %v40
    %v185 = vadd.s32 %v168, 3
    %v186 = vand.u32 %v185, 3
    %vm187 = vcmp.lt.s32.totalorder %v186, 2
    %vm188 = vcmp.eq.s32.totalorder %v186, 0
    %v189 = vxor.u32 %v183, 2147483648
    %v190 = vsel %vm188, %v175, %v189
    %vm191 = vcmp.eq.s32.totalorder %v186, 2
    %v192 = vxor.u32 %v175, 2147483648
    %v193 = vsel %vm191, %v192, %v183
    %v194 = vsel %vm187, %v190, %v193
    %v195 = vsel %vm184, nan, %v194
    %196 = vst [vmem:[#allocation2] sm:$0xf] %v195
    // Predicated region
    $region14: #{tpu_custom_call.1} parent=1 // pred_check
      _
    $region15: #{tpu_custom_call.1} parent=1 // pred_check_branch
      %198 = sbr.rel (0) target = $region17
    $region16: #{tpu_custom_call.1} parent=1 // pred_region
      %200 = vsyncadd [#allocation3], 0
      %s202 = sshll.u32 [#allocation2], 4
      %s203 = int_to_ptr.vmem [resolvable:$true] %s202
      %s204 = sshll.u32 %s3, 4
      %s205 = int_to_ptr.hbm [resolvable:$true] %s204
      %207 = dma.vmem_to_hbm [thread:$0]  %s203, 64, %s205, [#allocation3]
    $region17: #{tpu_custom_call.1} parent=1 // pred_fallthru
      _
    // Predicated region
    $region18: #{tpu_custom_call.1} parent=1 // pred_check
      _
    $region19: #{tpu_custom_call.1} parent=1 // pred_check_branch
      %209 = sbr.rel (0) target = $region21
    $region20: #{tpu_custom_call.1} parent=1 // pred_region
      %211 = dma.done [#allocation3], 64
    $region21: #{tpu_custom_call.1} parent=1 // pred_fallthru
      _
    %212 = vsyncpa [#allocation3], 1

</llo_original>
